<compile_context>
chip_gen: v7x
topology: tpu7x:2x2x1
jax: 0.10.0
libtpu: 0.0.40
codegen_flags: <defaults>
</compile_context>

<pallas_src>
import math

import jax
import jax.numpy as jnp
from jax.experimental import pallas as pl
from jax.experimental.pallas import tpu as pltpu


# Conservative double-buffer budget: fits under a 32 MiB scoped VMEM limit on
# every generation (v7x has only 64 MiB physical VMEM).
_VMEM_BUDGET_BYTES = 24 * 1024 * 1024


def _scalar_mix_kernel(w_ref, *refs):
    # w_ref  : SMEM (N,) float32 -- gamma * softmax(weights), pre-scaled in wrapper
    # refs   : N input VMEM tiles (tm, lane) + 1 output VMEM tile (tm, lane)
    x_refs = refs[:-1]
    o_ref = refs[-1]
    # N is small and static: fully unrolled weighted-sum reduction over layers.
    acc = w_ref[0] * x_refs[0][...].astype(jnp.float32)
    for k in range(1, len(x_refs)):
        acc = acc + w_ref[k] * x_refs[k][...].astype(jnp.float32)
    o_ref[...] = acc.astype(o_ref.dtype)


def _plan_tiling(total_elems, n_layers, elem_bytes):
    """Choose (lane, rows, tm, padded_total) for a lane-dense elementwise layout."""
    # Lane-dense last dim: large multiple of 128 so stores are unmasked vst.
    lane = None
    for c in (2048, 1024, 512, 256, 128):
        if total_elems % c == 0:
            lane = c
            break
    if lane is None:
        lane = 128  # ragged fallback: pad up to a multiple of 128
    padded_total = ((total_elems + lane - 1) // lane) * lane
    rows = padded_total // lane

    # Largest row tile whose double-buffered (N inputs + 1 output) footprint
    # stays within the VMEM budget (f32-conservative per-row size).
    per_row_bytes = max(elem_bytes, 4) * lane
    cap = max(8, _VMEM_BUDGET_BYTES // (2 * (n_layers + 1) * per_row_bytes))

    if rows <= cap:
        tm = rows  # single full block (always layout-legal)
    else:
        cap8 = max(8, (cap // 8) * 8)
        tm = None
        for cand in range(cap8, 0, -8):  # multiple-of-8 divisor, no padding needed
            if rows % cand == 0:
                tm = cand
                break
        if tm is None:
            tm = cap8
            rows = ((rows + tm - 1) // tm) * tm
            padded_total = rows * lane
    return lane, rows, tm, padded_total


def scalar_mix(tensors, weights, gamma):
    """tensors: list of N arrays of identical shape. Returns their scalar mixture."""
    n_layers = len(tensors)
    orig_shape = tensors[0].shape
    dtype = tensors[0].dtype
    elem_bytes = jnp.dtype(dtype).itemsize
    total = math.prod(orig_shape)

    lane, rows, tm, padded_total = _plan_tiling(total, n_layers, elem_bytes)
    pad = padded_total - total

    def to2d(t):
        flat = t.reshape(-1)
        if pad:
            flat = jnp.pad(flat, (0, pad))
        return flat.reshape(rows, lane)

    xs = [to2d(t) for t in tensors]

    # Parameter glue (free scalar work in the wrapper):
    #   dropout is identity at p=0; fold gamma into the normalized weights.
    # TODO(synk): weight dropout (p>0, training) not implemented.
    gamma_scalar = jnp.asarray(gamma, jnp.float32).reshape(-1)[0]
    scaled_w = gamma_scalar * jax.nn.softmax(weights.astype(jnp.float32), axis=-1)

    cost = pl.CostEstimate(
        flops=2 * n_layers * padded_total,
        transcendentals=0,
        bytes_accessed=(n_layers + 1) * padded_total * elem_bytes,
    )

    tile_spec = pl.BlockSpec((tm, lane), lambda i: (i, 0))
    out = pl.pallas_call(
        _scalar_mix_kernel,
        out_shape=jax.ShapeDtypeStruct((rows, lane), dtype),
        grid_spec=pl.GridSpec(
            grid=(rows // tm,),
            in_specs=[pl.BlockSpec(memory_space=pltpu.MemorySpace.SMEM)]  # weights
                     + [tile_spec] * n_layers,                            # N layers
            out_specs=tile_spec,
        ),
        compiler_params=pltpu.CompilerParams(
            dimension_semantics=("parallel",),
            vmem_limit_bytes=32 * 1024 * 1024,
        ),
        cost_estimate=cost,
    )(scaled_w, *xs)

    if pad:
        out = out.reshape(-1)[:total]
    return out.reshape(orig_shape)


if __name__ == "__main__":
    key = jax.random.PRNGKey(0)
    n_layers, batch, seq, hidden = 4, 2, 8, 32

    # Deterministic inputs: N layer activations, each (B, S, H).
    keys = jax.random.split(key, n_layers)
    tensors = [jax.random.normal(k, (batch, seq, hidden), jnp.float32) for k in keys]

    # Deterministic parameter init per the module's __init__:
    #   weights = zeros(n_layers), gamma = [1.0]
    weights = jnp.zeros((n_layers,), jnp.float32)
    gamma = jnp.array([1.0], jnp.float32)

    out = scalar_mix(tensors, weights, gamma)
    out = jax.block_until_ready(out)

    # Pure-JAX reference check (f32).
    normed = jax.nn.softmax(weights)
    ref = gamma[0] * sum(w * t for w, t in zip(normed, tensors))
    assert out.shape == (batch, seq, hidden)
    assert jnp.allclose(out, ref, atol=1e-5, rtol=1e-5)

    # Secondary check: bf16 activations exercise the in-kernel f32 upcast path.
    tensors_bf16 = [t.astype(jnp.bfloat16) for t in tensors]
    w2 = jax.random.normal(jax.random.PRNGKey(1), (n_layers,), jnp.float32)
    out_bf16 = jax.block_until_ready(scalar_mix(tensors_bf16, w2, gamma))
    normed2 = jax.nn.softmax(w2)
    ref_bf16 = gamma[0] * sum(w * t.astype(jnp.float32)
                              for w, t in zip(normed2, tensors_bf16))
    assert jnp.allclose(out_bf16.astype(jnp.float32), ref_bf16, atol=2e-2, rtol=2e-2)

    print("KERNEL_OK")
</pallas_src>

<mosaic_0001>
module attributes {stable_mosaic.version = 11 : i64} {
  func.func @_scalar_mix_kernel(%arg0: i32, %arg1: memref<4xf32, #tpu.memory_space<smem>>, %arg2: memref<1x512xf32, #tpu.memory_space<vmem>>, %arg3: memref<1x512xf32, #tpu.memory_space<vmem>>, %arg4: memref<1x512xf32, #tpu.memory_space<vmem>>, %arg5: memref<1x512xf32, #tpu.memory_space<vmem>>, %arg6: memref<1x512xf32, #tpu.memory_space<vmem>>) attributes {dimension_semantics = [#tpu.dimension_semantics<parallel>], iteration_bounds = array<i64: 1>, scalar_prefetch = 0 : i64, scratch_operands = 0 : i64, tpu.core_type = #tpu.core_type<tc>, window_params = [{transform_indices = @transform_0, window_bounds = array<i64: 4>}, {transform_indices = @transform_1, window_bounds = array<i64: 1, 512>}, {transform_indices = @transform_2, window_bounds = array<i64: 1, 512>}, {transform_indices = @transform_3, window_bounds = array<i64: 1, 512>}, {transform_indices = @transform_4, window_bounds = array<i64: 1, 512>}, {transform_indices = @transform_5, window_bounds = array<i64: 1, 512>}]} {
    %c0 = arith.constant 0 : index
    %0 = memref.load %arg1[%c0] : memref<4xf32, #tpu.memory_space<smem>>
    %c0_0 = arith.constant 0 : index
    %c0_1 = arith.constant 0 : index
    %1 = vector.load %arg2[%c0_0, %c0_1] : memref<1x512xf32, #tpu.memory_space<vmem>>, vector<1x512xf32>
    %2 = vector.broadcast %0 : f32 to vector<1x512xf32>
    %3 = arith.mulf %2, %1 : vector<1x512xf32>
    %c1 = arith.constant 1 : index
    %4 = memref.load %arg1[%c1] : memref<4xf32, #tpu.memory_space<smem>>
    %c0_2 = arith.constant 0 : index
    %c0_3 = arith.constant 0 : index
    %5 = vector.load %arg3[%c0_2, %c0_3] : memref<1x512xf32, #tpu.memory_space<vmem>>, vector<1x512xf32>
    %6 = vector.broadcast %4 : f32 to vector<1x512xf32>
    %7 = arith.mulf %6, %5 : vector<1x512xf32>
    %8 = arith.addf %3, %7 : vector<1x512xf32>
    %c2 = arith.constant 2 : index
    %9 = memref.load %arg1[%c2] : memref<4xf32, #tpu.memory_space<smem>>
    %c0_4 = arith.constant 0 : index
    %c0_5 = arith.constant 0 : index
    %10 = vector.load %arg4[%c0_4, %c0_5] : memref<1x512xf32, #tpu.memory_space<vmem>>, vector<1x512xf32>
    %11 = vector.broadcast %9 : f32 to vector<1x512xf32>
    %12 = arith.mulf %11, %10 : vector<1x512xf32>
    %13 = arith.addf %8, %12 : vector<1x512xf32>
    %c3 = arith.constant 3 : index
    %14 = memref.load %arg1[%c3] : memref<4xf32, #tpu.memory_space<smem>>
    %c0_6 = arith.constant 0 : index
    %c0_7 = arith.constant 0 : index
    %15 = vector.load %arg5[%c0_6, %c0_7] : memref<1x512xf32, #tpu.memory_space<vmem>>, vector<1x512xf32>
    %16 = vector.broadcast %14 : f32 to vector<1x512xf32>
    %17 = arith.mulf %16, %15 : vector<1x512xf32>
    %18 = arith.addf %13, %17 : vector<1x512xf32>
    %c0_8 = arith.constant 0 : index
    %c0_9 = arith.constant 0 : index
    %19 = vector.load %arg6[%c0_8, %c0_9] : memref<1x512xf32, #tpu.memory_space<vmem>>, vector<1x512xf32>
    tpu.vector_store %arg6[%c0_8, %c0_9], %18 {strides = array<i32>} : memref<1x512xf32, #tpu.memory_space<vmem>>, vector<1x512xf32>,
    return
  }
  func.func @transform_0(%arg0: i32) -> i32 {
    %c0_i32 = arith.constant 0 : i32
    %c0_i32_0 = arith.constant 0 : i32
    return %c0_i32 : i32
  }
  func.func @transform_1(%arg0: i32) -> (i32, i32) {
    %c0_i32 = arith.constant 0 : i32
    %c0_i32_0 = arith.constant 0 : i32
    return %arg0, %c0_i32 : i32, i32
  }
  func.func @transform_2(%arg0: i32) -> (i32, i32) {
    %c0_i32 = arith.constant 0 : i32
    %c0_i32_0 = arith.constant 0 : i32
    return %arg0, %c0_i32 : i32, i32
  }
  func.func @transform_3(%arg0: i32) -> (i32, i32) {
    %c0_i32 = arith.constant 0 : i32
    %c0_i32_0 = arith.constant 0 : i32
    return %arg0, %c0_i32 : i32, i32
  }
  func.func @transform_4(%arg0: i32) -> (i32, i32) {
    %c0_i32 = arith.constant 0 : i32
    %c0_i32_0 = arith.constant 0 : i32
    return %arg0, %c0_i32 : i32, i32
  }
  func.func @transform_5(%arg0: i32) -> (i32, i32) {
    %c0_i32 = arith.constant 0 : i32
    %c0_i32_0 = arith.constant 0 : i32
    return %arg0, %c0_i32 : i32, i32
  }
}

</mosaic_0001>

<llo_original>
// kernel: tpu_custom_call.1
$region0: #{tpu_custom_call.1}
  #allocation0 [shape = 'u32[]', space=smem, size = 0x4, offset = 0x4, fixed_abs, tag = 'smem constant byte address 0x4 - core index']
  #allocation1 [shape = 'u32[144,128]{1,0:T(1,128)}', space=vmem, size = 0x12000, scoped, tag = 'internal scratch']
  %s0 = inlined_call_operand.hbm [shape: f32[4], index: 0, kind: input, shape index: {}]
  %s1 = inlined_call_operand.hbm [shape: f32[1,512], index: 1, kind: input, shape index: {}]
  %s2 = inlined_call_operand.vmem [shape: f32[1,512], index: 2, kind: input, shape index: {}]
  %s3 = inlined_call_operand.vmem [shape: f32[1,512], index: 3, kind: input, shape index: {}]
  %s4 = inlined_call_operand.vmem [shape: f32[1,512], index: 4, kind: input, shape index: {}]
  %s5 = inlined_call_operand.hbm [shape: f32[1,512], index: 5, kind: output, shape index: {}]
  %s6 = sld [smem:[#allocation0]]
  $region38: #{tpu_custom_call.1} parent=0
    _
  %s8 = ssub.s32 1, %s6
  %s9 = scalar_select 0, %s8, %s6
  $region1: #{tpu_custom_call.1} parent=0
    #allocation2 [shape = 'u8[512]{0}', space=smem, size = 0x200, scoped, tag = 'input window, operand 0, single buffered']
    #allocation3 [shape = 's32[1]{0}', space=sflag, size = 0x4, scoped, tag = 'scoped memory for tpu_custom_call.1']
    #allocation4 [shape = 's32[1]{0}', space=sflag, size = 0x4, scoped, tag = 'scoped memory for tpu_custom_call.1']
    #allocation5 [shape = 's32[1]{0}', space=sflag, size = 0x4, scoped, tag = 'scoped memory for tpu_custom_call.1']
    #allocation6 [shape = 'u8[2048]{0}', space=vmem, size = 0x800, scoped, tag = 'input window, operand 1, single buffered']
    #allocation7 [shape = 'u8[2048]{0}', space=vmem, size = 0x800, scoped, tag = 'output window, operand 0, single buffered']
    %10 = vsyncpa [#allocation5], 0
    %11 = vsyncpa [#allocation3], 0
    %12 = vsyncpa [#allocation4], 0
    // Predicated region
    $region2: #{tpu_custom_call.1} parent=1 // pred_check
      _
    $region3: #{tpu_custom_call.1} parent=1 // pred_check_branch
      %14 = sbr.rel (0) target = $region5
    $region4: #{tpu_custom_call.1} parent=1 // pred_region
      %s16 = ssub.s32 16, 16
      %17 = vsyncadd [#allocation5], %s16
      %20 = dma.hbm_to_smem %s0, 16, [#allocation2], [#allocation5]
    $region5: #{tpu_custom_call.1} parent=1 // pred_fallthru
      _
    // Predicated region
    $region6: #{tpu_custom_call.1} parent=1 // pred_check
      _
    $region7: #{tpu_custom_call.1} parent=1 // pred_check_branch
      %22 = sbr.rel (0) target = $region9
    $region8: #{tpu_custom_call.1} parent=1 // pred_region
      %s24 = ssub.s32 64, 64
      %25 = vsyncadd [#allocation3], %s24
      %s27 = sshll.u32 [#allocation6], 4
      %s28 = int_to_ptr.vmem [resolvable:$true] %s27
      %30 = dma.hbm_to_vmem [thread:$0]  %s1, 64, %s28, [#allocation3]
    $region9: #{tpu_custom_call.1} parent=1 // pred_fallthru
      _
    // Predicated region
    $region10: #{tpu_custom_call.1} parent=1 // pred_check
      _
    $region11: #{tpu_custom_call.1} parent=1 // pred_check_branch
      %32 = sbr.rel (0) target = $region13
    $region12: #{tpu_custom_call.1} parent=1 // pred_region
      _
    $region13: #{tpu_custom_call.1} parent=1 // pred_fallthru
      _
    // Predicated region
    $region14: #{tpu_custom_call.1} parent=1 // pred_check
      _
    $region15: #{tpu_custom_call.1} parent=1 // pred_check_branch
      %34 = sbr.rel (0) target = $region17
    $region16: #{tpu_custom_call.1} parent=1 // pred_region
      _
    $region17: #{tpu_custom_call.1} parent=1 // pred_fallthru
      _
    // Predicated region
    $region18: #{tpu_custom_call.1} parent=1 // pred_check
      _
    $region19: #{tpu_custom_call.1} parent=1 // pred_check_branch
      %36 = sbr.rel (0) target = $region21
    $region20: #{tpu_custom_call.1} parent=1 // pred_region
      _
    $region21: #{tpu_custom_call.1} parent=1 // pred_fallthru
      _
    // Predicated region
    $region22: #{tpu_custom_call.1} parent=1 // pred_check
      _
    $region23: #{tpu_custom_call.1} parent=1 // pred_check_branch
      %38 = sbr.rel (0) target = $region25
    $region24: #{tpu_custom_call.1} parent=1 // pred_region
      %39 = dma.done [#allocation5], 16
    $region25: #{tpu_custom_call.1} parent=1 // pred_fallthru
      _
    // Predicated region
    $region26: #{tpu_custom_call.1} parent=1 // pred_check
      _
    $region27: #{tpu_custom_call.1} parent=1 // pred_check_branch
      %41 = sbr.rel (0) target = $region29
    $region28: #{tpu_custom_call.1} parent=1 // pred_region
      %42 = dma.done [#allocation3], 64
    $region29: #{tpu_custom_call.1} parent=1 // pred_fallthru
      _
    %43 = sfence
    %s44 = sld [smem:[#allocation2]]
    %v45 = vld [vmem:[#allocation6] sm:$0xf]
    %v46 = vstv %s44
    %v47 = vmul.f32 %v46, %v45
    %s48 = sld [smem:[#allocation2 + $0x1]]
    %v49 = vld [vmem:[%s2] sm:$0xf]
    %v50 = vstv %s48
    %v51 = vmul.f32 %v50, %v49
    %v52 = vadd.f32 %v47, %v51
    %s53 = sld [smem:[#allocation2 + $0x2]]
    %v54 = vld [vmem:[%s3] sm:$0xf]
    %v55 = vstv %s53
    %v56 = vmul.f32 %v55, %v54
    %v57 = vadd.f32 %v52, %v56
    %s58 = sld [smem:[#allocation2 + $0x3]]
    %v59 = vld [vmem:[%s4] sm:$0xf]
    %v60 = vstv %s58
    %v61 = vmul.f32 %v60, %v59
    %v62 = vadd.f32 %v57, %v61
    %v63 = vlaneseq
    %vm64 = vcmp.ge.s32.totalorder %v63, 0
    %vm65 = vcmp.lt.s32.totalorder %v63, 512
    %vm66 = vmand %vm64, %vm65
    %67 = vst.msk [vmem:[#allocation7] sm:$0xf] %vm66, %v62
    // Predicated region
    $region30: #{tpu_custom_call.1} parent=1 // pred_check
      _
    $region31: #{tpu_custom_call.1} parent=1 // pred_check_branch
      %69 = sbr.rel (0) target = $region33
    $region32: #{tpu_custom_call.1} parent=1 // pred_region
      %s71 = ssub.s32 64, 64
      %72 = vsyncadd [#allocation4], %s71
      %s74 = sshll.u32 [#allocation7], 4
      %s75 = int_to_ptr.vmem [resolvable:$true] %s74
      %77 = dma.vmem_to_hbm [thread:$0]  %s75, 64, %s5, [#allocation4]
    $region33: #{tpu_custom_call.1} parent=1 // pred_fallthru
      _
    // Predicated region
    $region34: #{tpu_custom_call.1} parent=1 // pred_check
      _
    $region35: #{tpu_custom_call.1} parent=1 // pred_check_branch
      %79 = sbr.rel (0) target = $region37
    $region36: #{tpu_custom_call.1} parent=1 // pred_region
      %80 = dma.done [#allocation4], 64
    $region37: #{tpu_custom_call.1} parent=1 // pred_fallthru
      _
    %81 = vsyncpa [#allocation3], 1
    %82 = vsyncpa [#allocation4], 1
    %83 = vsyncpa [#allocation5], 1

</llo_original>
